<compile_context>
chip_gen: v7x
topology: tpu7x:2x2x1
jax: 0.10.0
libtpu: 0.0.40
codegen_flags: <defaults>
</compile_context>

<pallas_src>
import functools

import jax
import jax.numpy as jnp
import numpy as np
from jax.experimental import pallas as pl
from jax.experimental.pallas import tpu as pltpu

IGNORE_INDEX = -100
NUM_CORES = 2                              # "parallel" grid axis; uses both v7x TCs, harmless on 1-TC chips
_VMEM_LIMIT_BYTES = 48 * 1024 * 1024       # safe on v7x (64 MiB physical) and v5e/v6e
_LOGITS_VMEM_BUDGET = 32 * 1024 * 1024     # budget for the double-buffered logits tile


def _cdiv(a, b):
    return (a + b - 1) // b


def _round_up(a, b):
    return _cdiv(a, b) * b


def _auto_tile_m(rows_per_core, vocab, itemsize):
    """Largest row tile (multiple of 8, <=512) whose double-buffered logits block fits the budget."""
    per_row = max(1, 2 * vocab * itemsize)          # x2: double buffering
    tm = (_LOGITS_VMEM_BUDGET // per_row) // 8 * 8
    tm = max(8, min(tm, 512))
    return min(tm, _round_up(max(rows_per_core, 1), 8))


def _prm_loss_kernel(inputs_ref, labels_ref, logits_ref, out_ref, *,
                     placeholder_token_id, ignore_index):
    # Per-core accumulator init on the first step of the inner (reduction) axis.
    @pl.when(pl.program_id(1) == 0)
    def _():
        out_ref[...] = jnp.zeros_like(out_ref)

    logits = logits_ref[...].astype(jnp.float32)        # (TM, V) — cast in-kernel
    labels = labels_ref[...]                            # (TM, 1) int32
    tokens = inputs_ref[...]                            # (TM, 1) int32
    tm, v = logits.shape

    ph_mask = tokens == placeholder_token_id            # (TM, 1) placeholder rows
    lab_ok = labels != ignore_index                     # (TM, 1)
    valid = ph_mask & lab_ok                            # loss-contributing rows

    # --- cross entropy (log-softmax over vocab) -------------------------------
    row_max = jnp.max(logits, axis=-1, keepdims=True)   # (TM, 1)
    shifted = logits - row_max                          # (TM, V)
    lse = jnp.log(jnp.sum(jnp.exp(shifted), axis=-1, keepdims=True))  # (TM, 1)

    col_ids = jax.lax.broadcasted_iota(jnp.int32, (tm, v), 1)          # (TM, V)
    safe_lab = jnp.where(lab_ok, labels, 0)             # clamp ignored labels for the one-hot
    onehot = col_ids == safe_lab                        # (TM, V)
    label_shift = jnp.sum(jnp.where(onehot, shifted, 0.0),
                          axis=-1, keepdims=True)       # (TM, 1) = logits[label] - row_max
    per_row_ce = lse - label_shift                      # (TM, 1)

    # --- accuracy over ALL placeholder positions (torch semantics) ------------
    # label column attains the row max  <=>  label_shift == 0.0 exactly.
    # (Only differs from torch argmax on exact ties, where torch takes the
    #  first max column; ignored-label rows count as incorrect, as in torch.)
    correct = valid & (label_shift == 0.0)              # (TM, 1)

    loss_sum = jnp.sum(jnp.where(valid, per_row_ce, 0.0), keepdims=True)   # (1, 1)
    loss_cnt = jnp.sum(valid.astype(jnp.float32), keepdims=True)           # (1, 1)
    acc_sum = jnp.sum(correct.astype(jnp.float32), keepdims=True)          # (1, 1)
    acc_cnt = jnp.sum(ph_mask.astype(jnp.float32), keepdims=True)          # (1, 1)

    # Fused lane-dense accumulator: row 0, lanes 0..3 hold the four partials.
    row = jax.lax.broadcasted_iota(jnp.int32, out_ref.shape, 0)
    lane = jax.lax.broadcasted_iota(jnp.int32, out_ref.shape, 1)
    r0 = row == 0
    m0 = (r0 & (lane == 0)).astype(jnp.float32)
    m1 = (r0 & (lane == 1)).astype(jnp.float32)
    m2 = (r0 & (lane == 2)).astype(jnp.float32)
    m3 = (r0 & (lane == 3)).astype(jnp.float32)
    out_ref[...] += loss_sum * m0 + loss_cnt * m1 + acc_sum * m2 + acc_cnt * m3


def prm_loss(inputs, logits, labels, *, placeholder_token_id, return_acc=False):
    """inputs/labels: (B, S) int ; logits: (B, S, V) float (any dtype, e.g. bf16)."""
    # TODO(synk): soft-label path (float labels) and reward_token_ids remapping of
    # PRMLoss are not implemented; this is the hard-label path (reward_token_ids=None).
    B, S = inputs.shape
    V = logits.shape[-1]
    N = B * S

    rows_per_core = _cdiv(N, NUM_CORES)
    tile_m = _auto_tile_m(rows_per_core, V, logits.dtype.itemsize)
    steps_per_core = _cdiv(rows_per_core, tile_m)
    n_pad = NUM_CORES * steps_per_core * tile_m

    inp = inputs.reshape(N, 1).astype(jnp.int32)
    lab = labels.reshape(N, 1).astype(jnp.int32)
    lgt = logits.reshape(N, V)                          # native dtype — no f32 upcast in HBM

    pad = n_pad - N
    if pad:
        # Pad rows must never look like placeholder positions and carry ignore labels,
        # so they contribute nothing to any sum/count.
        inp = jnp.concatenate(
            [inp, jnp.full((pad, 1), placeholder_token_id - 1, jnp.int32)])
        lab = jnp.concatenate([lab, jnp.full((pad, 1), IGNORE_INDEX, jnp.int32)])
        lgt = jnp.concatenate([lgt, jnp.zeros((pad, V), lgt.dtype)])

    kernel = functools.partial(
        _prm_loss_kernel,
        placeholder_token_id=placeholder_token_id,
        ignore_index=IGNORE_INDEX,
    )

    def row_block(c, i):
        return (c * steps_per_core + i, 0)

    out = pl.pallas_call(
        kernel,
        out_shape=jax.ShapeDtypeStruct((NUM_CORES * 8, 128), jnp.float32),
        grid_spec=pltpu.PrefetchScalarGridSpec(
            num_scalar_prefetch=0,
            grid=(NUM_CORES, steps_per_core),
            in_specs=[
                pl.BlockSpec((tile_m, 1), row_block),      # inputs
                pl.BlockSpec((tile_m, 1), row_block),      # labels
                pl.BlockSpec((tile_m, V), row_block),      # logits (native dtype)
            ],
            out_specs=pl.BlockSpec((8, 128), lambda c, i: (c, 0)),
        ),
        compiler_params=pltpu.CompilerParams(
            dimension_semantics=("parallel", "arbitrary"),
            vmem_limit_bytes=_VMEM_LIMIT_BYTES,
        ),
    )(inp, lab, lgt)

    totals = out.reshape(NUM_CORES, 8, 128)[:, 0, :4].sum(axis=0)   # (4,)
    loss_sum, loss_cnt, acc_sum, acc_cnt = totals[0], totals[1], totals[2], totals[3]
    # NOTE: loss is NaN when no placeholder row carries a valid (!=-100) label,
    # matching torch CrossEntropyLoss-with-ignore_index on an empty selection.
    loss = loss_sum / loss_cnt
    if not return_acc:
        return loss
    acc = acc_sum / acc_cnt
    return loss, acc


def _reference_numpy(inputs, logits, labels, placeholder_token_id):
    inp = np.asarray(inputs)
    lgt = np.asarray(logits, dtype=np.float64)
    lab = np.asarray(labels)
    m = inp == placeholder_token_id
    sel_logits = lgt[m]                       # (K, V)
    sel_labels = lab[m]                       # (K,)
    valid = sel_labels != IGNORE_INDEX
    shifted = sel_logits - sel_logits.max(-1, keepdims=True)
    logp = shifted - np.log(np.exp(shifted).sum(-1, keepdims=True))
    ce = -logp[np.arange(len(sel_labels))[valid], sel_labels[valid]]
    loss = ce.mean()
    acc = (sel_logits.argmax(-1) == sel_labels).astype(np.float64).mean()
    return loss, acc


if __name__ == "__main__":
    key = jax.random.PRNGKey(0)
    k1, k2, k3 = jax.random.split(key, 3)

    B, S, V = 2, 8, 32
    PLACEHOLDER = 5

    # Deterministic token ids with guaranteed placeholder positions.
    inputs = jax.random.randint(k1, (B, S), 0, 10, dtype=jnp.int32)
    inputs = inputs.at[0, 2].set(PLACEHOLDER)
    inputs = inputs.at[0, 6].set(PLACEHOLDER)
    inputs = inputs.at[1, 1].set(PLACEHOLDER)
    inputs = inputs.at[1, 5].set(PLACEHOLDER)

    logits = jax.random.normal(k2, (B, S, V), dtype=jnp.float32)

    labels = jax.random.randint(k3, (B, S), 0, V, dtype=jnp.int32)
    # One placeholder position carries the ignore_index (exercises the CE mask
    # and the "ignored placeholder counts as incorrect" accuracy path).
    labels = labels.at[1, 5].set(IGNORE_INDEX)

    loss, acc = prm_loss(inputs, logits, labels,
                         placeholder_token_id=PLACEHOLDER, return_acc=True)
    loss = jax.block_until_ready(loss)
    acc = jax.block_until_ready(acc)

    ref_loss, ref_acc = _reference_numpy(inputs, logits, labels, PLACEHOLDER)
    np.testing.assert_allclose(float(loss), ref_loss, rtol=1e-5, atol=1e-5)
    np.testing.assert_allclose(float(acc), ref_acc, rtol=1e-6, atol=1e-6)

    print("KERNEL_OK")
</pallas_src>

<mosaic_0001>
module attributes {stable_mosaic.version = 11 : i64} {
  func.func @_prm_loss_kernel(%arg0: i32, %arg1: i32, %arg2: memref<8x1xi32, #tpu.memory_space<vmem>>, %arg3: memref<8x1xi32, #tpu.memory_space<vmem>>, %arg4: memref<8x32xf32, #tpu.memory_space<vmem>>, %arg5: memref<8x128xf32, #tpu.memory_space<vmem>>) attributes {dimension_semantics = [#tpu.dimension_semantics<parallel>, #tpu.dimension_semantics<arbitrary>], iteration_bounds = array<i64: 2, 1>, scalar_prefetch = 0 : i64, scratch_operands = 0 : i64, tpu.core_type = #tpu.core_type<tc>, window_params = [{transform_indices = @transform_0, window_bounds = array<i64: 8, 1>}, {transform_indices = @transform_1, window_bounds = array<i64: 8, 1>}, {transform_indices = @transform_2, window_bounds = array<i64: 8, 32>}, {transform_indices = @transform_3, window_bounds = array<i64: 8, 128>}]} {
    %c0_i32 = arith.constant 0 : i32
    %0 = arith.cmpi eq, %arg1, %c0_i32 : i32
    %1 = arith.extui %0 : i1 to i32
    %c0_i32_0 = arith.constant 0 : i32
    %2 = arith.cmpi ne, %1, %c0_i32_0 : i32
    scf.if %2 {
      %cst_22 = arith.constant 0.000000e+00 : f32
      %98 = vector.broadcast %cst_22 : f32 to vector<8x128xf32>
      %c0_23 = arith.constant 0 : index
      %c0_24 = arith.constant 0 : index
      %99 = vector.load %arg5[%c0_23, %c0_24] : memref<8x128xf32, #tpu.memory_space<vmem>>, vector<8x128xf32>
      tpu.vector_store %arg5[%c0_23, %c0_24], %98 {strides = array<i32>} : memref<8x128xf32, #tpu.memory_space<vmem>>, vector<8x128xf32>,
    } else {
    }
    %c0 = arith.constant 0 : index
    %c0_1 = arith.constant 0 : index
    %3 = vector.load %arg4[%c0, %c0_1] : memref<8x32xf32, #tpu.memory_space<vmem>>, vector<8x32xf32>
    %c0_2 = arith.constant 0 : index
    %c0_3 = arith.constant 0 : index
    %4 = vector.load %arg3[%c0_2, %c0_3] : memref<8x1xi32, #tpu.memory_space<vmem>>, vector<8x1xi32>
    %c0_4 = arith.constant 0 : index
    %c0_5 = arith.constant 0 : index
    %5 = vector.load %arg2[%c0_4, %c0_5] : memref<8x1xi32, #tpu.memory_space<vmem>>, vector<8x1xi32>
    %c5_i32 = arith.constant 5 : i32
    %6 = vector.broadcast %c5_i32 : i32 to vector<8x1xi32>
    %7 = arith.cmpi eq, %5, %6 : vector<8x1xi32>
    %c-100_i32 = arith.constant -100 : i32
    %8 = vector.broadcast %c-100_i32 : i32 to vector<8x1xi32>
    %9 = arith.cmpi ne, %4, %8 : vector<8x1xi32>
    %10 = arith.andi %7, %9 : vector<8x1xi1>
    %cst = arith.constant dense<0xFF800000> : vector<8xf32>
    %11 = vector.multi_reduction <maximumf>, %3, %cst [1] : vector<8x32xf32> to vector<8xf32>
    %12 = vector.shape_cast %11 : vector<8xf32> to vector<8x1xf32>
    %13 = vector.broadcast %12 : vector<8x1xf32> to vector<8x32xf32>
    %14 = arith.subf %3, %13 : vector<8x32xf32>
    %15 = math.exp %14 : vector<8x32xf32>
    %cst_6 = arith.constant dense<0.000000e+00> : vector<8xf32>
    %16 = vector.multi_reduction <add>, %15, %cst_6 [1] : vector<8x32xf32> to vector<8xf32>
    %17 = vector.shape_cast %16 : vector<8xf32> to vector<8x1xf32>
    %18 = math.log %17 : vector<8x1xf32>
    %19 = tpu.iota {dimensions = array<i32: 1>} : vector<8x32xi32>
    %c0_i32_7 = arith.constant 0 : i32
    %20 = vector.broadcast %c0_i32_7 : i32 to vector<8x1xi32>
    %21 = arith.select %9, %4, %20 : vector<8x1xi1>, vector<8x1xi32>
    %22 = vector.broadcast %21 : vector<8x1xi32> to vector<8x32xi32>
    %23 = arith.cmpi eq, %19, %22 : vector<8x32xi32>
    %cst_8 = arith.constant 0.000000e+00 : f32
    %24 = vector.broadcast %cst_8 : f32 to vector<8x32xf32>
    %25 = arith.select %23, %14, %24 : vector<8x32xi1>, vector<8x32xf32>
    %cst_9 = arith.constant dense<0.000000e+00> : vector<8xf32>
    %26 = vector.multi_reduction <add>, %25, %cst_9 [1] : vector<8x32xf32> to vector<8xf32>
    %27 = vector.shape_cast %26 : vector<8xf32> to vector<8x1xf32>
    %28 = arith.subf %18, %27 : vector<8x1xf32>
    %cst_10 = arith.constant 0.000000e+00 : f32
    %29 = vector.broadcast %cst_10 : f32 to vector<8x1xf32>
    %30 = arith.cmpf oeq, %27, %29 : vector<8x1xf32>
    %31 = arith.andi %10, %30 : vector<8x1xi1>
    %cst_11 = arith.constant 0.000000e+00 : f32
    %32 = vector.broadcast %cst_11 : f32 to vector<8x1xf32>
    %33 = arith.select %10, %28, %32 : vector<8x1xi1>, vector<8x1xf32>
    %34 = vector.shape_cast %33 : vector<8x1xf32> to vector<1x8x1xf32>
    %cst_12 = arith.constant dense<0.000000e+00> : vector<1xf32>
    %35 = vector.multi_reduction <add>, %34, %cst_12 [1, 2] : vector<1x8x1xf32> to vector<1xf32>
    %36 = vector.shape_cast %35 : vector<1xf32> to vector<1x1x1xf32>
    %37 = vector.extract %36[0, 0, 0] : f32 from vector<1x1x1xf32>
    %38 = vector.broadcast %37 : f32 to vector<1x1xf32>
    %39 = arith.extui %10 : vector<8x1xi1> to vector<8x1xi32>
    %40 = arith.sitofp %39 : vector<8x1xi32> to vector<8x1xf32>
    %41 = vector.shape_cast %40 : vector<8x1xf32> to vector<1x8x1xf32>
    %cst_13 = arith.constant dense<0.000000e+00> : vector<1xf32>
    %42 = vector.multi_reduction <add>, %41, %cst_13 [1, 2] : vector<1x8x1xf32> to vector<1xf32>
    %43 = vector.shape_cast %42 : vector<1xf32> to vector<1x1x1xf32>
    %44 = vector.extract %43[0, 0, 0] : f32 from vector<1x1x1xf32>
    %45 = vector.broadcast %44 : f32 to vector<1x1xf32>
    %46 = arith.extui %31 : vector<8x1xi1> to vector<8x1xi32>
    %47 = arith.sitofp %46 : vector<8x1xi32> to vector<8x1xf32>
    %48 = vector.shape_cast %47 : vector<8x1xf32> to vector<1x8x1xf32>
    %cst_14 = arith.constant dense<0.000000e+00> : vector<1xf32>
    %49 = vector.multi_reduction <add>, %48, %cst_14 [1, 2] : vector<1x8x1xf32> to vector<1xf32>
    %50 = vector.shape_cast %49 : vector<1xf32> to vector<1x1x1xf32>
    %51 = vector.extract %50[0, 0, 0] : f32 from vector<1x1x1xf32>
    %52 = vector.broadcast %51 : f32 to vector<1x1xf32>
    %53 = arith.extui %7 : vector<8x1xi1> to vector<8x1xi32>
    %54 = arith.sitofp %53 : vector<8x1xi32> to vector<8x1xf32>
    %55 = vector.shape_cast %54 : vector<8x1xf32> to vector<1x8x1xf32>
    %cst_15 = arith.constant dense<0.000000e+00> : vector<1xf32>
    %56 = vector.multi_reduction <add>, %55, %cst_15 [1, 2] : vector<1x8x1xf32> to vector<1xf32>
    %57 = vector.shape_cast %56 : vector<1xf32> to vector<1x1x1xf32>
    %58 = vector.extract %57[0, 0, 0] : f32 from vector<1x1x1xf32>
    %59 = vector.broadcast %58 : f32 to vector<1x1xf32>
    %60 = tpu.iota {dimensions = array<i32: 0>} : vector<8x128xi32>
    %61 = tpu.iota {dimensions = array<i32: 1>} : vector<8x128xi32>
    %c0_i32_16 = arith.constant 0 : i32
    %62 = vector.broadcast %c0_i32_16 : i32 to vector<8x128xi32>
    %63 = arith.cmpi eq, %60, %62 : vector<8x128xi32>
    %c0_i32_17 = arith.constant 0 : i32
    %64 = vector.broadcast %c0_i32_17 : i32 to vector<8x128xi32>
    %65 = arith.cmpi eq, %61, %64 : vector<8x128xi32>
    %66 = arith.andi %63, %65 : vector<8x128xi1>
    %67 = arith.extui %66 : vector<8x128xi1> to vector<8x128xi32>
    %68 = arith.sitofp %67 : vector<8x128xi32> to vector<8x128xf32>
    %c1_i32 = arith.constant 1 : i32
    %69 = vector.broadcast %c1_i32 : i32 to vector<8x128xi32>
    %70 = arith.cmpi eq, %61, %69 : vector<8x128xi32>
    %71 = arith.andi %63, %70 : vector<8x128xi1>
    %72 = arith.extui %71 : vector<8x128xi1> to vector<8x128xi32>
    %73 = arith.sitofp %72 : vector<8x128xi32> to vector<8x128xf32>
    %c2_i32 = arith.constant 2 : i32
    %74 = vector.broadcast %c2_i32 : i32 to vector<8x128xi32>
    %75 = arith.cmpi eq, %61, %74 : vector<8x128xi32>
    %76 = arith.andi %63, %75 : vector<8x128xi1>
    %77 = arith.extui %76 : vector<8x128xi1> to vector<8x128xi32>
    %78 = arith.sitofp %77 : vector<8x128xi32> to vector<8x128xf32>
    %c3_i32 = arith.constant 3 : i32
    %79 = vector.broadcast %c3_i32 : i32 to vector<8x128xi32>
    %80 = arith.cmpi eq, %61, %79 : vector<8x128xi32>
    %81 = arith.andi %63, %80 : vector<8x128xi1>
    %82 = arith.extui %81 : vector<8x128xi1> to vector<8x128xi32>
    %83 = arith.sitofp %82 : vector<8x128xi32> to vector<8x128xf32>
    %c0_18 = arith.constant 0 : index
    %c0_19 = arith.constant 0 : index
    %84 = vector.load %arg5[%c0_18, %c0_19] : memref<8x128xf32, #tpu.memory_space<vmem>>, vector<8x128xf32>
    %85 = vector.broadcast %38 : vector<1x1xf32> to vector<8x128xf32>
    %86 = arith.mulf %85, %68 : vector<8x128xf32>
    %87 = vector.broadcast %45 : vector<1x1xf32> to vector<8x128xf32>
    %88 = arith.mulf %87, %73 : vector<8x128xf32>
    %89 = arith.addf %86, %88 : vector<8x128xf32>
    %90 = vector.broadcast %52 : vector<1x1xf32> to vector<8x128xf32>
    %91 = arith.mulf %90, %78 : vector<8x128xf32>
    %92 = arith.addf %89, %91 : vector<8x128xf32>
    %93 = vector.broadcast %59 : vector<1x1xf32> to vector<8x128xf32>
    %94 = arith.mulf %93, %83 : vector<8x128xf32>
    %95 = arith.addf %92, %94 : vector<8x128xf32>
    %96 = arith.addf %84, %95 : vector<8x128xf32>
    %c0_20 = arith.constant 0 : index
    %c0_21 = arith.constant 0 : index
    %97 = vector.load %arg5[%c0_20, %c0_21] : memref<8x128xf32, #tpu.memory_space<vmem>>, vector<8x128xf32>
    tpu.vector_store %arg5[%c0_20, %c0_21], %96 {strides = array<i32>} : memref<8x128xf32, #tpu.memory_space<vmem>>, vector<8x128xf32>,
    return
  }
  func.func @transform_0(%arg0: i32, %arg1: i32) -> (i32, i32) {
    %c1_i32 = arith.constant 1 : i32
    %0 = arith.muli %arg0, %c1_i32 : i32
    %1 = arith.addi %0, %arg1 : i32
    %c0_i32 = arith.constant 0 : i32
    %c0_i32_0 = arith.constant 0 : i32
    return %1, %c0_i32 : i32, i32
  }
  func.func @transform_1(%arg0: i32, %arg1: i32) -> (i32, i32) {
    %c1_i32 = arith.constant 1 : i32
    %0 = arith.muli %arg0, %c1_i32 : i32
    %1 = arith.addi %0, %arg1 : i32
    %c0_i32 = arith.constant 0 : i32
    %c0_i32_0 = arith.constant 0 : i32
    return %1, %c0_i32 : i32, i32
  }
  func.func @transform_2(%arg0: i32, %arg1: i32) -> (i32, i32) {
    %c1_i32 = arith.constant 1 : i32
    %0 = arith.muli %arg0, %c1_i32 : i32
    %1 = arith.addi %0, %arg1 : i32
    %c0_i32 = arith.constant 0 : i32
    %c0_i32_0 = arith.constant 0 : i32
    return %1, %c0_i32 : i32, i32
  }
  func.func @transform_3(%arg0: i32, %arg1: i32) -> (i32, i32) {
    %c0_i32 = arith.constant 0 : i32
    %c0_i32_0 = arith.constant 0 : i32
    return %arg0, %c0_i32 : i32, i32
  }
}

</mosaic_0001>

<llo_original>
// kernel: tpu_custom_call.1
$region0: #{tpu_custom_call.1}
  #allocation0 [shape = 'u32[]', space=smem, size = 0x4, offset = 0x4, fixed_abs, tag = 'smem constant byte address 0x4 - core index']
  #allocation1 [shape = 'u32[144,128]{1,0:T(1,128)}', space=vmem, size = 0x12000, scoped, tag = 'internal scratch']
  %s0 = inlined_call_operand.vmem [shape: s32[16,1], index: 0, kind: input, shape index: {}]
  %s1 = inlined_call_operand.vmem [shape: s32[16,1], index: 1, kind: input, shape index: {}]
  %s2 = inlined_call_operand.vmem [shape: f32[16,32], index: 2, kind: input, shape index: {}]
  %s3 = inlined_call_operand.hbm [shape: f32[16,128], index: 3, kind: output, shape index: {}]
  %s4 = sld [smem:[#allocation0]]
  $region49: #{tpu_custom_call.1} parent=0
    _
  %s6 = ssub.s32 1, %s4
  %s7 = scalar_select 0, %s6, %s4
  $region1: #{tpu_custom_call.1} parent=0
    #allocation2 [shape = 'u8[8192]{0}', space=vmem, size = 0x2000, scoped, tag = 'output window, operand 0']
    #allocation3 [shape = 's32[2]{0}', space=sflag, size = 0x8, scoped, tag = 'scoped memory for tpu_custom_call.1']
    %8 = vsyncpa [#allocation3], 0
    %s9 = scalar_lea.sflag [#allocation3], 1
    %10 = vsyncpa %s9, 0
    loop: start=0, step=1, limit=4
    $region2: #{tpu_custom_call.1} parent=1 // loop_pre_header
      _
    $region3: #{tpu_custom_call.1} parent=1 // loop_header
      %s12 = sphi 0, %s16
      %p13 = scmp.ge.s32.totalorder %s12, 4
      %s19 = sphi 0, %s31
      %s20 = sphi 0, %s27
      %s21 = sphi 0, %s19
      %s22 = sphi 0, %s20
      %s23 = sphi 0, %s21
      %s24 = sphi 0, %s22
      %s36 = sphi 0, %s38
      %s39 = sphi 0, %s36
      %s40 = sphi 0, %s39
      %s56 = sphi 0, %s40
      %s64 = sphi 0, %s66
      %s67 = sphi 0, %s64
      %s68 = sphi 0, %s67
      %s84 = sphi 0, %s68
      %s92 = sphi 0, %s94
      %s95 = sphi 0, %s92
      %s96 = sphi 0, %s95
      %s112 = sphi 0, %s96
      %s118 = sphi 0, %s120
      %s121 = sphi 0, %s118
      %s122 = sphi 0, %s121
      %s138 = sphi 0, %s122
    $region4: #{tpu_custom_call.1} parent=1 // loop_header_branch
      %15 = sbr.rel (%p13) target = $region8
    $region5: #{tpu_custom_call.1} parent=1 // loop_body
      %s17 = ssub.s32 %s12, 1
      %s18 = ssub.s32 %s12, 2
      %s25 = sadd.s32 1, %s20
      %p26 = scmp.ge.s32.totalorder %s25, 1
      %s27 = scalar_select %p26, 0, %s25
      %s28 = sadd.s32 1, %s19
      %s29 = scalar_select %p26, %s28, %s19
      %p30 = scmp.ge.s32.totalorder %s29, 2
      %s31 = scalar_select %p30, 0, %s29
      %s32 = sadd.s32 %s19, %s20
      %s33 = sadd.s32 %s31, %s27
      %s34 = ssub.s32 %s32, %s33
      %p35 = scmp.eq.s32.totalorder %s34, 0
      %s37 = sadd.s32 %s36, 1
      %s38 = scalar_select %p35, %s36, %s37
      %p41 = pneg %p35
      %p42 = scmp.eq.s32.totalorder %s12, 1
      %p43 = por %p41, %p42
      %p44 = scmp.ne.s32.totalorder %s36, %s39
      %p45 = scmp.eq.s32.totalorder %s12, 0
      %p46 = por %p44, %p45
      %p47 = scmp.ne.s32.totalorder %s36, %s39
      %p48 = scmp.eq.s32.totalorder %s17, 1
      %p49 = por %p47, %p48
      %p50 = scmp.ne.s32.totalorder %s39, %s40
      %p51 = scmp.eq.s32.totalorder %s17, 0
      %p52 = por %p50, %p51
      %p53 = scmp.ne.s32.totalorder %s39, %s40
      %p54 = scmp.eq.s32.totalorder %s18, 1
      %p55 = por %p53, %p54
      %p57 = scmp.ne.s32.totalorder %s40, %s56
      %p58 = scmp.eq.s32.totalorder %s18, 0
      %p59 = por %p57, %p58
      %s60 = sadd.s32 %s19, %s20
      %s61 = sadd.s32 %s31, %s27
      %s62 = ssub.s32 %s60, %s61
      %p63 = scmp.eq.s32.totalorder %s62, 0
      %s65 = sadd.s32 %s64, 1
      %s66 = scalar_select %p63, %s64, %s65
      %p69 = pneg %p63
      %p70 = scmp.eq.s32.totalorder %s12, 1
      %p71 = por %p69, %p70
      %p72 = scmp.ne.s32.totalorder %s64, %s67
      %p73 = scmp.eq.s32.totalorder %s12, 0
      %p74 = por %p72, %p73
      %p75 = scmp.ne.s32.totalorder %s64, %s67
      %p76 = scmp.eq.s32.totalorder %s17, 1
      %p77 = por %p75, %p76
      %p78 = scmp.ne.s32.totalorder %s67, %s68
      %p79 = scmp.eq.s32.totalorder %s17, 0
      %p80 = por %p78, %p79
      %p81 = scmp.ne.s32.totalorder %s67, %s68
      %p82 = scmp.eq.s32.totalorder %s18, 1
      %p83 = por %p81, %p82
      %p85 = scmp.ne.s32.totalorder %s68, %s84
      %p86 = scmp.eq.s32.totalorder %s18, 0
      %p87 = por %p85, %p86
      %s88 = sadd.s32 %s19, %s20
      %s89 = sadd.s32 %s31, %s27
      %s90 = ssub.s32 %s88, %s89
      %p91 = scmp.eq.s32.totalorder %s90, 0
      %s93 = sadd.s32 %s92, 1
      %s94 = scalar_select %p91, %s92, %s93
      %p97 = pneg %p91
      %p98 = scmp.eq.s32.totalorder %s12, 1
      %p99 = por %p97, %p98
      %p100 = scmp.ne.s32.totalorder %s92, %s95
      %p101 = scmp.eq.s32.totalorder %s12, 0
      %p102 = por %p100, %p101
      %p103 = scmp.ne.s32.totalorder %s92, %s95
      %p104 = scmp.eq.s32.totalorder %s17, 1
      %p105 = por %p103, %p104
      %p106 = scmp.ne.s32.totalorder %s95, %s96
      %p107 = scmp.eq.s32.totalorder %s17, 0
      %p108 = por %p106, %p107
      %p109 = scmp.ne.s32.totalorder %s95, %s96
      %p110 = scmp.eq.s32.totalorder %s18, 1
      %p111 = por %p109, %p110
      %p113 = scmp.ne.s32.totalorder %s96, %s112
      %p114 = scmp.eq.s32.totalorder %s18, 0
      %p115 = por %p113, %p114
      %s116 = ssub.s32 %s19, %s31
      %p117 = scmp.eq.s32.totalorder %s116, 0
      %s119 = sadd.s32 %s118, 1
      %s120 = scalar_select %p117, %s118, %s119
      %p123 = pneg %p117
      %p124 = scmp.eq.s32.totalorder %s12, 1
      %p125 = por %p123, %p124
      %p126 = scmp.ne.s32.totalorder %s118, %s121
      %p127 = scmp.eq.s32.totalorder %s12, 0
      %p128 = por %p126, %p127
      %p129 = scmp.ne.s32.totalorder %s118, %s121
      %p130 = scmp.eq.s32.totalorder %s17, 1
      %p131 = por %p129, %p130
      %p132 = scmp.ne.s32.totalorder %s121, %s122
      %p133 = scmp.eq.s32.totalorder %s17, 0
      %p134 = por %p132, %p133
      %p135 = scmp.ne.s32.totalorder %s121, %s122
      %p136 = scmp.eq.s32.totalorder %s18, 1
      %p137 = por %p135, %p136
      %p139 = scmp.ne.s32.totalorder %s122, %s138
      %p140 = scmp.eq.s32.totalorder %s18, 0
      %p141 = por %p139, %p140
      %p142 = scmp.le.s32.totalorder 1, %s12
      %p143 = scmp.lt.s32.totalorder %s12, 3
      %p144 = pnand %p142, %p143
      %p145 = pneg %p144
      // Predicated region
      $region9: #{tpu_custom_call.1} parent=5 // pred_check
        _
      $region10: #{tpu_custom_call.1} parent=5 // pred_check_branch
        %147 = sbr.rel (%p144) target = $region12
      $region11: #{tpu_custom_call.1} parent=5 // pred_region
        %s148 = ssub.s32 %s12, 1
      $region12: #{tpu_custom_call.1} parent=5 // pred_fallthru
        _
      %p149 = scmp.lt.s32.totalorder %s12, 2
      // Predicated region
      $region13: #{tpu_custom_call.1} parent=5 // pred_check
        %p150 = pneg %p149
      $region14: #{tpu_custom_call.1} parent=5 // pred_check_branch
        %152 = sbr.rel (%p150) target = $region16
      $region15: #{tpu_custom_call.1} parent=5 // pred_region
        // Predicated region
        $region17: #{tpu_custom_call.1} parent=15 // pred_check
          %p153 = pneg %p46
        $region18: #{tpu_custom_call.1} parent=15 // pred_check_branch
          %155 = sbr.rel (%p153) target = $region20
        $region19: #{tpu_custom_call.1} parent=15 // pred_region
          %s156 = sadd.s32 %s19, %s20
          %p157 = scmp.lt.s32.totalorder %s156, 1
          %s158 = scalar_select %p157, %s156, 1
          %s159 = smul.addr %s158, 8
          %s160 = scalar_lea.vmem %s0, %s159
          %s161 = sadd.s32 %s19, %s20
        $region20: #{tpu_custom_call.1} parent=15 // pred_fallthru
          _
        // Predicated region
        $region21: #{tpu_custom_call.1} parent=15 // pred_check
          %p162 = pneg %p74
        $region22: #{tpu_custom_call.1} parent=15 // pred_check_branch
          %164 = sbr.rel (%p162) target = $region24
        $region23: #{tpu_custom_call.1} parent=15 // pred_region
          %s165 = sadd.s32 %s19, %s20
          %p166 = scmp.lt.s32.totalorder %s165, 1
          %s167 = scalar_select %p166, %s165, 1
          %s168 = smul.addr %s167, 8
          %s169 = scalar_lea.vmem %s1, %s168
          %s170 = sadd.s32 %s19, %s20
        $region24: #{tpu_custom_call.1} parent=15 // pred_fallthru
          _
        // Predicated region
        $region25: #{tpu_custom_call.1} parent=15 // pred_check
          %p171 = pneg %p102
        $region26: #{tpu_custom_call.1} parent=15 // pred_check_branch
          %173 = sbr.rel (%p171) target = $region28
        $region27: #{tpu_custom_call.1} parent=15 // pred_region
          %s174 = sadd.s32 %s19, %s20
          %p175 = scmp.lt.s32.totalorder %s174, 1
          %s176 = scalar_select %p175, %s174, 1
          %s177 = smul.addr %s176, 8
          %s178 = scalar_lea.vmem %s2, %s177
          %s179 = sadd.s32 %s19, %s20
        $region28: #{tpu_custom_call.1} parent=15 // pred_fallthru
          _
      $region16: #{tpu_custom_call.1} parent=5 // pred_fallthru
        _
      %p180 = scmp.le.s32.totalorder 1, %s12
      %p181 = scmp.lt.s32.totalorder %s12, 3
      %p182 = pnand %p180, %p181
      %p183 = pneg %p182
      // Predicated region
      $region29: #{tpu_custom_call.1} parent=5 // pred_check
        _
      $region30: #{tpu_custom_call.1} parent=5 // pred_check_branch
        %185 = sbr.rel (%p182) target = $region32
      $region31: #{tpu_custom_call.1} parent=5 // pred_region
        %s186 = ssub.s32 %s12, 1
        %s187 = sadd.s32 %s21, %s22
        %p188 = scmp.lt.s32.totalorder %s187, 1
        %s189 = scalar_select %p188, %s187, 1
        %s190 = smul.addr %s189, 8
        %s191 = scalar_lea.vmem %s0, %s190
        %p192 = pneg %p52
        %p193 = pneg %p49
        %s194 = sadd.s32 %s21, %s22
        %p195 = scmp.lt.s32.totalorder %s194, 1
        %s196 = scalar_select %p195, %s194, 1
        %s197 = smul.addr %s196, 8
        %s198 = scalar_lea.vmem %s1, %s197
        %p199 = pneg %p80
        %p200 = pneg %p77
        %s201 = sadd.s32 %s21, %s22
        %p202 = scmp.lt.s32.totalorder %s201, 1
        %s203 = scalar_select %p202, %s201, 1
        %s204 = smul.addr %s203, 8
        %s205 = scalar_lea.vmem %s2, %s204
        %p206 = pneg %p108
        %p207 = pneg %p105
        %p208 = pneg %p134
        %p209 = pneg %p131
        %s210 = sand.u32 %s121, 1
        %s211 = scalar_lea.sflag [#allocation3], %s210
        %s212 = sand.u32 %s121, 1
        %s213 = smul.addr %s212, 8
        %s214 = scalar_lea.vmem [#allocation2], %s213
        %s215 = sadd.s32 %s21, %s22
        %p216 = scmp.lt.s32.totalorder %s215, 1
        %s217 = scalar_select %p216, %s215, 1
        %s218 = smul.addr %s217, 8
        %s219 = scalar_lea.vmem %s0, %s218
        %s220 = sadd.s32 %s21, %s22
        %s221 = sadd.s32 %s21, %s22
        %p222 = scmp.lt.s32.totalorder %s221, 1
        %s223 = scalar_select %p222, %s221, 1
        %s224 = smul.addr %s223, 8
        %s225 = scalar_lea.vmem %s1, %s224
        %s226 = sadd.s32 %s21, %s22
        %s227 = sadd.s32 %s21, %s22
        %p228 = scmp.lt.s32.totalorder %s227, 1
        %s229 = scalar_select %p228, %s227, 1
        %s230 = smul.addr %s229, 8
        %s231 = scalar_lea.vmem %s2, %s230
        %s232 = sadd.s32 %s21, %s22
        %p233 = scmp.eq.s32.totalorder %s22, 0
        // Predicated region
        $region33: #{tpu_custom_call.1} parent=31 // pred_check
          %p234 = pneg %p233
        $region34: #{tpu_custom_call.1} parent=31 // pred_check_branch
          %236 = sbr.rel (%p234) target = $region36
        $region35: #{tpu_custom_call.1} parent=31 // pred_region
          %237 = vst [vmem:[%s214] sm:$0xff] 0.0
        $region36: #{tpu_custom_call.1} parent=31 // pred_fallthru
          _
        %v238 = vld [vmem:[%s231] sm:$0xff]
        %v239 = vld [vmem:[%s225] sm:$0xff]
        %v240 = vld [vmem:[%s219] sm:$0xff]
        %vm241 = vcmp.eq.s32.totalorder %v240, 5
        %vm242 = vcmp.ne.s32.totalorder %v239, 4294967196
        %vm243 = vmand %vm241, %vm242
        %vm244 = vcmask 261120
        %v245 = vsel %vm244, %v238, -inf
        %246 = vmax.xlane.f32.xlu0 %v245
        %v247 = vpop.xlane.xlu0 %246
        %v248 = vsub.f32 %v238, %v247
        %v249 = vmul.f32 %v248, 1.442695
        %v250 = vpow.pop %v249
        %v251 = vsel %vm244, %v250, 0.0
        %252 = vadd.xlane.f32.xlu0 %v251
        %v253 = vpop.xlane.xlu0 %252
        %v254 = vlog2.pop %v253
        %v255 = vmul.f32 %v254, 0.6931472
        %v256 = vlaneseq
        %v257 = vand.u32 %v256, 127
        %v258 = vsel %vm242, %v239, 0
        %259 = vset.pattern.permute.xlu0 0
        %260 = vperm.xlu0 %259, %v258
        %v261 = vpop.permute.xlu0 %260
        %vm262 = vcmp.eq.s32.totalorder %v257, %v261
        %v263 = vsel %vm262, %v248, 0.0
        %v264 = vsel %vm244, %v263, 0.0
        %265 = vadd.xlane.f32.xlu0 %v264
        %v266 = vpop.xlane.xlu0 %265
        %v267 = vsub.f32 %v255, %v266
        %vm268 = vcmp.eq.f32.partialorder %v266, 0.0
        %vm269 = vmand %vm243, %vm268
        %v270 = vsel %vm243, %v267, 0.0
        %vm271 = vcmask 7168
        %v272 = vsel %vm271, %v270, 0.0
        %273 = vadd.xlane.f32.xlu0 %v272
        %v274 = vpop.xlane.xlu0 %273
        %v275 = vrot.slane %v274, 4
        %v276 = vadd.f32 %v274, %v275
        %v277 = vrot.slane %v276, 2
        %v278 = vadd.f32 %v276, %v277
        %v279 = vrot.slane %v278, 1
        %v280 = vadd.f32 %v278, %v279
        %s281 = vtos %v280
        %v282 = vsel %vm243, 1, 0
        %v283 = vcvt.s32.f32 %v282
        %v284 = vsel %vm271, %v283, 0.0
        %285 = vadd.xlane.f32.xlu0 %v284
        %v286 = vpop.xlane.xlu0 %285
        %v287 = vrot.slane %v286, 4
        %v288 = vadd.f32 %v286, %v287
        %v289 = vrot.slane %v288, 2
        %v290 = vadd.f32 %v288, %v289
        %v291 = vrot.slane %v290, 1
        %v292 = vadd.f32 %v290, %v291
        %s293 = vtos %v292
        %v294 = vsel %vm269, 1, 0
        %v295 = vcvt.s32.f32 %v294
        %v296 = vsel %vm271, %v295, 0.0
        %297 = vadd.xlane.f32.xlu0 %v296
        %v298 = vpop.xlane.xlu0 %297
        %v299 = vrot.slane %v298, 4
        %v300 = vadd.f32 %v298, %v299
        %v301 = vrot.slane %v300, 2
        %v302 = vadd.f32 %v300, %v301
        %v303 = vrot.slane %v302, 1
        %v304 = vadd.f32 %v302, %v303
        %s305 = vtos %v304
        %v306 = vsel %vm241, 1, 0
        %v307 = vcvt.s32.f32 %v306
        %v308 = vsel %vm271, %v307, 0.0
        %309 = vadd.xlane.f32.xlu0 %v308
        %v310 = vpop.xlane.xlu0 %309
        %v311 = vrot.slane %v310, 4
        %v312 = vadd.f32 %v310, %v311
        %v313 = vrot.slane %v312, 2
        %v314 = vadd.f32 %v312, %v313
        %v315 = vrot.slane %v314, 1
        %v316 = vadd.f32 %v314, %v315
        %s317 = vtos %v316
        %v318 = vlaneseq
        %v319 = vshrl.u32 %v318, 7
        %vm320 = vcmp.eq.s32.totalorder %v319, 0
        %vm321 = vcmp.eq.s32.totalorder %v257, 0
        %vm322 = vmand %vm320, %vm321
        %v323 = vsel %vm322, 1, 0
        %v324 = vcvt.s32.f32 %v323
        %vm325 = vcmp.eq.s32.totalorder %v257, 1
        %vm326 = vmand %vm320, %vm325
        %v327 = vsel %vm326, 1, 0
        %v328 = vcvt.s32.f32 %v327
        %vm329 = vcmp.eq.s32.totalorder %v257, 2
        %vm330 = vmand %vm320, %vm329
        %v331 = vsel %vm330, 1, 0
        %v332 = vcvt.s32.f32 %v331
        %vm333 = vcmp.eq.s32.totalorder %v257, 3
        %vm334 = vmand %vm320, %vm333
        %v335 = vsel %vm334, 1, 0
        %v336 = vcvt.s32.f32 %v335
        %v337 = vld [vmem:[%s214] sm:$0xff]
        %v338 = vstv %s281
        %v339 = vmul.f32 %v338, %v324
        %v340 = vstv %s293
        %v341 = vmul.f32 %v340, %v328
        %v342 = vadd.f32 %v339, %v341
        %v343 = vstv %s305
        %v344 = vmul.f32 %v343, %v332
        %v345 = vadd.f32 %v342, %v344
        %v346 = vstv %s317
        %v347 = vmul.f32 %v346, %v336
        %v348 = vadd.f32 %v345, %v347
        %v349 = vadd.f32 %v337, %v348
        %350 = vst [vmem:[%s214] sm:$0xff] %v349
        %s351 = sand.u32 %s121, 1
        %s352 = scalar_lea.sflag [#allocation3], %s351
        %s353 = sand.u32 %s121, 1
        %s354 = smul.addr %s353, 8
        %s355 = scalar_lea.vmem [#allocation2], %s354
        // Predicated region
        $region37: #{tpu_custom_call.1} parent=31 // pred_check
          %p356 = pneg %p131
        $region38: #{tpu_custom_call.1} parent=31 // pred_check_branch
          %358 = sbr.rel (%p356) target = $region40
        $region39: #{tpu_custom_call.1} parent=31 // pred_region
          %s360 = ssub.s32 128, 128
          %361 = vsyncadd %s352, %s360
          %s362 = smul.addr %s21, 128
          %s363 = scalar_lea.hbm %s3, %s362
          %s365 = sshll.u32 %s355, 4
          %s366 = int_to_ptr.vmem [resolvable:$true] %s365
          %368 = dma.vmem_to_hbm [thread:$0]  %s366, 128, %s363, %s352
        $region40: #{tpu_custom_call.1} parent=31 // pred_fallthru
          _
      $region32: #{tpu_custom_call.1} parent=5 // pred_fallthru
        _
      %p369 = scmp.le.s32.totalorder 2, %s12
      // Predicated region
      $region41: #{tpu_custom_call.1} parent=5 // pred_check
        %p370 = pneg %p369
      $region42: #{tpu_custom_call.1} parent=5 // pred_check_branch
        %372 = sbr.rel (%p370) target = $region44
      $region43: #{tpu_custom_call.1} parent=5 // pred_region
        %s373 = ssub.s32 %s12, 2
        // Predicated region
        $region45: #{tpu_custom_call.1} parent=43 // pred_check
          %p374 = pneg %p137
        $region46: #{tpu_custom_call.1} parent=43 // pred_check_branch
          %376 = sbr.rel (%p374) target = $region48
        $region47: #{tpu_custom_call.1} parent=43 // pred_region
          %s377 = sand.u32 %s122, 1
          %s378 = scalar_lea.sflag [#allocation3], %s377
          %s379 = sand.u32 %s122, 1
          %s380 = smul.addr %s379, 8
          %s381 = scalar_lea.vmem [#allocation2], %s380
          %382 = dma.done %s378, 128
        $region48: #{tpu_custom_call.1} parent=43 // pred_fallthru
          _
      $region44: #{tpu_custom_call.1} parent=5 // pred_fallthru
        _
    $region6: #{tpu_custom_call.1} parent=1 // loop_footer
      %s16 = sadd.s32 1, %s12
    $region7: #{tpu_custom_call.1} parent=1 // loop_footer_branch
      %11 = sbr.rel target = $region3
    $region8: #{tpu_custom_call.1} parent=1 // loop_exit
      _
    %383 = vsyncpa [#allocation3], 1
    %s384 = scalar_lea.sflag [#allocation3], 1
    %385 = vsyncpa %s384, 1

</llo_original>
